<compile_context>
chip_gen: v7x
topology: tpu7x:2x2x1
jax: 0.10.0
libtpu: 0.0.40
codegen_flags: <defaults>
</compile_context>

<pallas_src>
import jax
import jax.numpy as jnp
from jax import lax
from jax.experimental import pallas as pl
from jax.experimental.pallas import tpu as pltpu


def _round_up(x, m):
    return ((x + m - 1) // m) * m


# ---------------------------------------------------------------------------
# Kernels
# ---------------------------------------------------------------------------
def _conv_bn_relu_kernel(patches_ref, w_ref, scale_ref, bias_ref, out_ref):
    # (Cconv, K) @ (K, TM) -> (Cconv, TM): MXU matmul, f32 accumulation.
    acc = jnp.dot(w_ref[...], patches_ref[...], preferred_element_type=jnp.float32)
    y = acc * scale_ref[...] + bias_ref[...]          # fused BatchNorm affine
    out_ref[...] = jnp.maximum(y, 0.0)                # ReLU


def _pool_relu_kernel(views_ref, out_ref):
    # 2x2 max over the 4 shifted views, then ReLU.
    m0 = jnp.maximum(views_ref[0], views_ref[1])
    m1 = jnp.maximum(views_ref[2], views_ref[3])
    out_ref[...] = jnp.maximum(jnp.maximum(m0, m1), 0.0)


# ---------------------------------------------------------------------------
# Wrapper
# ---------------------------------------------------------------------------
def downsampling_forward(x, conv_w, bn_gamma, bn_beta, bn_mean, bn_var,
                         eps=1e-5, compute_dtype=jnp.bfloat16):
    N, Cin, H, W = x.shape
    Cconv = conv_w.shape[0]                 # = out_channels - in_channels
    OH = (H + 2 - 3) // 2 + 1               # == ceil(H/2)
    OW = (W + 2 - 3) // 2 + 1
    K = Cin * 9
    M = N * OH * OW

    # ---- conv path glue: im2col, transposed so M sits on the lane axis ----
    xp = jnp.pad(x, ((0, 0), (0, 0), (1, 2), (1, 2)))
    views = [xp[:, :, dh:dh + 2 * OH:2, dw:dw + 2 * OW:2]
             for dh in range(3) for dw in range(3)]
    patches = jnp.stack(views, axis=2)                       # (N, Cin, 9, OH, OW)
    patches_t = patches.transpose(1, 2, 0, 3, 4).reshape(K, M)

    # Fold eval-mode BatchNorm into per-channel scale / bias (kept in f32).
    scale = (bn_gamma / jnp.sqrt(bn_var + eps)).astype(jnp.float32)
    bias = (bn_beta - bn_mean * scale).astype(jnp.float32)

    # Tile the M (lane) axis; K and Cconv are left unpadded.
    TM = min(2048, _round_up(M, 256))
    Mp = _round_up(M, TM)
    grid_m = Mp // TM

    patches_p = jnp.pad(patches_t.astype(compute_dtype), ((0, 0), (0, Mp - M)))
    w2d = conv_w.reshape(Cconv, K).astype(compute_dtype)     # (Cconv, K)
    scale2d = scale.reshape(Cconv, 1)
    bias2d = bias.reshape(Cconv, 1)

    itemsize = jnp.dtype(compute_dtype).itemsize
    cost = pl.CostEstimate(
        flops=2 * Mp * K * Cconv,
        transcendentals=0,
        bytes_accessed=(K * Mp + Cconv * K) * itemsize + Cconv * Mp * 4,
    )

    conv_out = pl.pallas_call(
        _conv_bn_relu_kernel,
        out_shape=jax.ShapeDtypeStruct((Cconv, Mp), jnp.float32),
        grid=(grid_m,),
        in_specs=[
            pl.BlockSpec((K, TM), lambda i: (0, i)),          # streamed patches tile
            pl.BlockSpec((Cconv, K), lambda i: (0, 0)),       # resident weight
            pl.BlockSpec((Cconv, 1), lambda i: (0, 0)),       # resident BN scale
            pl.BlockSpec((Cconv, 1), lambda i: (0, 0)),       # resident BN bias
        ],
        out_specs=pl.BlockSpec((Cconv, TM), lambda i: (0, i)),
        compiler_params=pltpu.CompilerParams(dimension_semantics=("parallel",)),
        cost_estimate=cost,
    )(patches_p, w2d, scale2d, bias2d)

    conv_nchw = conv_out[:, :M].reshape(Cconv, N, OH, OW).transpose(1, 0, 2, 3)

    # ---- pool path glue: 4 shifted views, flattened to a lane-dense slab ----
    PH, PW = -(-H // 2), -(-W // 2)
    neg = jnp.finfo(jnp.float32).min
    xq = jnp.pad(x, ((0, 0), (0, 0), (0, 2 * PH - H), (0, 2 * PW - W)),
                 constant_values=neg)
    P = N * Cin * PH * PW
    pv = jnp.stack([xq[:, :, 0::2, 0::2], xq[:, :, 0::2, 1::2],
                    xq[:, :, 1::2, 0::2], xq[:, :, 1::2, 1::2]],
                   axis=0).reshape(4, P).astype(jnp.float32)

    LPW = min(512, _round_up(P, 128))          # lane width (multiple of 128)
    rows = -(-P // LPW)
    TPR = min(256, _round_up(rows, 8))         # sublane rows per tile
    rows_p = _round_up(rows, TPR)
    Pp = rows_p * LPW
    pv_p = jnp.pad(pv, ((0, 0), (0, Pp - P)), constant_values=neg)
    pv_p = pv_p.reshape(4, rows_p, LPW)

    pool_out = pl.pallas_call(
        _pool_relu_kernel,
        out_shape=jax.ShapeDtypeStruct((rows_p, LPW), jnp.float32),
        grid=(rows_p // TPR,),
        in_specs=[pl.BlockSpec((4, TPR, LPW), lambda i: (0, i, 0))],
        out_specs=pl.BlockSpec((TPR, LPW), lambda i: (i, 0)),
        compiler_params=pltpu.CompilerParams(dimension_semantics=("parallel",)),
    )(pv_p)

    pool_nchw = pool_out.reshape(-1)[:P].reshape(N, Cin, PH, PW)

    return jnp.concatenate([conv_nchw, pool_nchw], axis=1)   # (N, Cout, OH, OW)


# ---------------------------------------------------------------------------
# Reference & test
# ---------------------------------------------------------------------------
def _reference(x, conv_w, g, b, m, v, eps=1e-5, conv_cast=None):
    xc = x if conv_cast is None else x.astype(conv_cast).astype(jnp.float32)
    wc = conv_w if conv_cast is None else conv_w.astype(conv_cast).astype(jnp.float32)
    y = lax.conv_general_dilated(xc, wc, window_strides=(2, 2),
                                 padding=((1, 1), (1, 1)),
                                 dimension_numbers=('NCHW', 'OIHW', 'NCHW'))
    scale = g / jnp.sqrt(v + eps)
    y = y * scale[None, :, None, None] + (b - m * scale)[None, :, None, None]
    N, C, H, W = x.shape
    PH, PW = -(-H // 2), -(-W // 2)
    xq = jnp.pad(x, ((0, 0), (0, 0), (0, 2 * PH - H), (0, 2 * PW - W)),
                 constant_values=-jnp.inf)
    p = lax.reduce_window(xq, -jnp.inf, lax.max, (1, 1, 2, 2), (1, 1, 2, 2), 'VALID')
    return jax.nn.relu(jnp.concatenate([y, p], axis=1))


def _run_case(key, N, Cin, Cout, H, W, compute_dtype, atol, rtol):
    Cconv = Cout - Cin
    kx, kw = jax.random.split(key)
    x = jax.random.normal(kx, (N, Cin, H, W), dtype=jnp.float32)
    conv_w = 0.1 * jax.random.normal(kw, (Cconv, Cin, 3, 3), dtype=jnp.float32)
    bn_gamma = 1.0 + 0.1 * jnp.arange(Cconv, dtype=jnp.float32)
    bn_beta = 0.05 * jnp.arange(Cconv, dtype=jnp.float32)
    bn_mean = 0.02 * jnp.arange(Cconv, dtype=jnp.float32)
    bn_var = 1.0 + 0.03 * jnp.arange(Cconv, dtype=jnp.float32)

    out = downsampling_forward(x, conv_w, bn_gamma, bn_beta, bn_mean, bn_var,
                               compute_dtype=compute_dtype)
    out = jax.block_until_ready(out)

    conv_cast = compute_dtype if compute_dtype != jnp.float32 else None
    ref = _reference(x, conv_w, bn_gamma, bn_beta, bn_mean, bn_var,
                     conv_cast=conv_cast)
    PH, PW = -(-H // 2), -(-W // 2)
    assert out.shape == (N, Cout, PH, PW), out.shape
    err = float(jnp.max(jnp.abs(out - ref)))
    assert jnp.allclose(out, ref, atol=atol, rtol=rtol), (str(compute_dtype), err)


if __name__ == "__main__":
    key = jax.random.PRNGKey(0)
    k1, k2, k3 = jax.random.split(key, 3)
    # Main (perf) config: bf16 MXU inputs, f32 accumulation.
    _run_case(k1, N=2, Cin=4, Cout=16, H=16, W=16,
              compute_dtype=jnp.bfloat16, atol=5e-3, rtol=5e-3)
    # Tight logic checks in f32, including odd spatial dims (ceil_mode pool path).
    _run_case(k2, N=2, Cin=4, Cout=16, H=16, W=16,
              compute_dtype=jnp.float32, atol=1e-4, rtol=1e-4)
    _run_case(k3, N=1, Cin=3, Cout=8, H=15, W=13,
              compute_dtype=jnp.float32, atol=1e-4, rtol=1e-4)
    print("KERNEL_OK")
</pallas_src>

<mosaic_0001>
module attributes {stable_mosaic.version = 11 : i64} {
  func.func @_conv_bn_relu_kernel(%arg0: i32, %arg1: memref<36x256xbf16, #tpu.memory_space<vmem>>, %arg2: memref<12x36xbf16, #tpu.memory_space<vmem>>, %arg3: memref<12x1xf32, #tpu.memory_space<vmem>>, %arg4: memref<12x1xf32, #tpu.memory_space<vmem>>, %arg5: memref<12x256xf32, #tpu.memory_space<vmem>>) attributes {dimension_semantics = [#tpu.dimension_semantics<parallel>], iteration_bounds = array<i64: 1>, scalar_prefetch = 0 : i64, scratch_operands = 0 : i64, tpu.core_type = #tpu.core_type<tc>, window_params = [{transform_indices = @transform_0, window_bounds = array<i64: 36, 256>}, {pipeline_mode = #tpu.pipeline_mode<synchronous>, transform_indices = @transform_1, window_bounds = array<i64: 12, 36>}, {pipeline_mode = #tpu.pipeline_mode<synchronous>, transform_indices = @transform_2, window_bounds = array<i64: 12, 1>}, {pipeline_mode = #tpu.pipeline_mode<synchronous>, transform_indices = @transform_3, window_bounds = array<i64: 12, 1>}, {transform_indices = @transform_4, window_bounds = array<i64: 12, 256>}]} {
    %c0 = arith.constant 0 : index
    %c0_0 = arith.constant 0 : index
    %0 = vector.load %arg2[%c0, %c0_0] : memref<12x36xbf16, #tpu.memory_space<vmem>>, vector<12x36xbf16>
    %c0_1 = arith.constant 0 : index
    %c0_2 = arith.constant 0 : index
    %1 = vector.load %arg1[%c0_1, %c0_2] : memref<36x256xbf16, #tpu.memory_space<vmem>>, vector<36x256xbf16>
    %cst = arith.constant dense<0.000000e+00> : vector<12x256xf32>
    %2 = tpu.matmul %0, %1, %cst {dimension_numbers = #tpu.dot_dimension_numbers<[1], [0], [0], [1], [0, 0, 1, 1], [], []>} : vector<12x36xbf16>, vector<36x256xbf16>, vector<12x256xf32> -> vector<12x256xf32>
    %c0_3 = arith.constant 0 : index
    %c0_4 = arith.constant 0 : index
    %3 = vector.load %arg3[%c0_3, %c0_4] : memref<12x1xf32, #tpu.memory_space<vmem>>, vector<12x1xf32>
    %4 = vector.broadcast %3 : vector<12x1xf32> to vector<12x256xf32>
    %5 = arith.mulf %2, %4 : vector<12x256xf32>
    %c0_5 = arith.constant 0 : index
    %c0_6 = arith.constant 0 : index
    %6 = vector.load %arg4[%c0_5, %c0_6] : memref<12x1xf32, #tpu.memory_space<vmem>>, vector<12x1xf32>
    %7 = vector.broadcast %6 : vector<12x1xf32> to vector<12x256xf32>
    %8 = arith.addf %5, %7 : vector<12x256xf32>
    %cst_7 = arith.constant 0.000000e+00 : f32
    %9 = vector.broadcast %cst_7 : f32 to vector<12x256xf32>
    %10 = arith.maximumf %8, %9 : vector<12x256xf32>
    %c0_8 = arith.constant 0 : index
    %c0_9 = arith.constant 0 : index
    %11 = vector.load %arg5[%c0_8, %c0_9] : memref<12x256xf32, #tpu.memory_space<vmem>>, vector<12x256xf32>
    tpu.vector_store %arg5[%c0_8, %c0_9], %10 {strides = array<i32>} : memref<12x256xf32, #tpu.memory_space<vmem>>, vector<12x256xf32>,
    return
  }
  func.func @transform_0(%arg0: i32) -> (i32, i32) {
    %c0_i32 = arith.constant 0 : i32
    %c0_i32_0 = arith.constant 0 : i32
    return %c0_i32, %arg0 : i32, i32
  }
  func.func @transform_1(%arg0: i32) -> (i32, i32) {
    %c0_i32 = arith.constant 0 : i32
    %c0_i32_0 = arith.constant 0 : i32
    %c0_i32_1 = arith.constant 0 : i32
    return %c0_i32, %c0_i32_0 : i32, i32
  }
  func.func @transform_2(%arg0: i32) -> (i32, i32) {
    %c0_i32 = arith.constant 0 : i32
    %c0_i32_0 = arith.constant 0 : i32
    %c0_i32_1 = arith.constant 0 : i32
    return %c0_i32, %c0_i32_0 : i32, i32
  }
  func.func @transform_3(%arg0: i32) -> (i32, i32) {
    %c0_i32 = arith.constant 0 : i32
    %c0_i32_0 = arith.constant 0 : i32
    %c0_i32_1 = arith.constant 0 : i32
    return %c0_i32, %c0_i32_0 : i32, i32
  }
  func.func @transform_4(%arg0: i32) -> (i32, i32) {
    %c0_i32 = arith.constant 0 : i32
    %c0_i32_0 = arith.constant 0 : i32
    return %c0_i32, %arg0 : i32, i32
  }
}

</mosaic_0001>

<llo_original>
// kernel: tpu_custom_call.1
$region0: #{tpu_custom_call.1}
  #allocation0 [shape = 'u32[]', space=smem, size = 0x4, offset = 0x4, fixed_abs, tag = 'smem constant byte address 0x4 - core index']
  #allocation1 [shape = 'u32[144,128]{1,0:T(1,128)}', space=vmem, size = 0x12000, scoped, tag = 'internal scratch']
  %s0 = inlined_call_operand.hbm [shape: bf16[36,256], index: 0, kind: input, shape index: {}]
  %s1 = inlined_call_operand.vmem [shape: bf16[12,36], index: 1, kind: input, shape index: {}]
  %s2 = inlined_call_operand.vmem [shape: f32[12,1], index: 2, kind: input, shape index: {}]
  %s3 = inlined_call_operand.vmem [shape: f32[12,1], index: 3, kind: input, shape index: {}]
  %s4 = inlined_call_operand.hbm [shape: f32[12,256], index: 4, kind: output, shape index: {}]
  %s5 = sld [smem:[#allocation0]]
  $region30: #{tpu_custom_call.1} parent=0
    _
  %s7 = ssub.s32 1, %s5
  %s8 = scalar_select 0, %s7, %s5
  $region1: #{tpu_custom_call.1} parent=0
    #allocation2 [shape = 'u8[20480]{0}', space=vmem, size = 0x5000, scoped, tag = 'input window, operand 0, single buffered']
    #allocation3 [shape = 's32[1]{0}', space=sflag, size = 0x4, scoped, tag = 'scoped memory for tpu_custom_call.1']
    #allocation4 [shape = 's32[1]{0}', space=sflag, size = 0x4, scoped, tag = 'scoped memory for tpu_custom_call.1']
    #allocation5 [shape = 'u8[16384]{0}', space=vmem, size = 0x4000, scoped, tag = 'output window, operand 0, single buffered']
    %9 = vsyncpa [#allocation3], 0
    %10 = vsyncpa [#allocation4], 0
    // Predicated region
    $region2: #{tpu_custom_call.1} parent=1 // pred_check
      _
    $region3: #{tpu_custom_call.1} parent=1 // pred_check_branch
      %12 = sbr.rel (0) target = $region5
    $region4: #{tpu_custom_call.1} parent=1 // pred_region
      %s14 = ssub.s32 640, 640
      %15 = vsyncadd [#allocation3], %s14
      %s16 = sshll.u32 [#allocation2], 4
      %s17 = int_to_ptr.vmem [resolvable:$true] %s16
      %22 = dma.hbm_to_vmem [thread:$0]  %s0, 640, %s17, [#allocation3], 128, 128, 8
    $region5: #{tpu_custom_call.1} parent=1 // pred_fallthru
      _
    // Predicated region
    $region6: #{tpu_custom_call.1} parent=1 // pred_check
      _
    $region7: #{tpu_custom_call.1} parent=1 // pred_check_branch
      %24 = sbr.rel (0) target = $region9
    $region8: #{tpu_custom_call.1} parent=1 // pred_region
      _
    $region9: #{tpu_custom_call.1} parent=1 // pred_fallthru
      _
    // Predicated region
    $region10: #{tpu_custom_call.1} parent=1 // pred_check
      _
    $region11: #{tpu_custom_call.1} parent=1 // pred_check_branch
      %26 = sbr.rel (0) target = $region13
    $region12: #{tpu_custom_call.1} parent=1 // pred_region
      _
    $region13: #{tpu_custom_call.1} parent=1 // pred_fallthru
      _
    // Predicated region
    $region14: #{tpu_custom_call.1} parent=1 // pred_check
      _
    $region15: #{tpu_custom_call.1} parent=1 // pred_check_branch
      %28 = sbr.rel (0) target = $region17
    $region16: #{tpu_custom_call.1} parent=1 // pred_region
      _
    $region17: #{tpu_custom_call.1} parent=1 // pred_fallthru
      _
    // Predicated region
    $region18: #{tpu_custom_call.1} parent=1 // pred_check
      _
    $region19: #{tpu_custom_call.1} parent=1 // pred_check_branch
      %30 = sbr.rel (0) target = $region21
    $region20: #{tpu_custom_call.1} parent=1 // pred_region
      %31 = dma.done [#allocation3], 640
    $region21: #{tpu_custom_call.1} parent=1 // pred_fallthru
      _
    %v33 = vld [vmem:[%s1] sm:$0xf]
    %v34 = vld [vmem:[%s1 + $0x4] sm:$0x3]
    %v35 = vld [vmem:[#allocation2] sm:$0xff]
    %v36 = vld [vmem:[#allocation2 + $0x8] sm:$0xff]
    %v37 = vld [vmem:[#allocation2 + $0x10] sm:$0xff]
    %v38 = vld [vmem:[#allocation2 + $0x18] sm:$0xff]
    %v39 = vld [vmem:[#allocation2 + $0x20] sm:$0x33]
    %v42 = vunpack.c.l.b16 %v33
    %v43 = vunpack.c.l.b16 %v34
    %v44 = vpack.c.b16 %v43, %v42
    %v50 = vunpack.c.l.b16 %v35
    %v51 = vunpack.c.h.b16 %v35
    %v52 = vunpack.c.l.b16 %v36
    %v53 = vunpack.c.h.b16 %v36
    %v54 = vunpack.c.l.b16 %v37
    %v55 = vunpack.c.h.b16 %v37
    %v56 = vunpack.c.l.b16 %v38
    %v57 = vunpack.c.h.b16 %v38
    %v58 = vunpack.c.l.b16 %v39
    %v59 = vunpack.c.h.b16 %v39
    %v60 = vpack.c.b16 %v52, %v50
    %v61 = vpack.c.b16 %v53, %v51
    %v62 = vpack.c.b16 %v56, %v54
    %v63 = vpack.c.b16 %v57, %v55
    %v64 = vpack.c.b16 %v58, %v58
    %v65 = vpack.c.b16 %v59, %v59
    %vm70 = vcmask 293888
    %v72 = vsel %vm70, %v44, 0
    %vm74 = vcmask 1041408
    %v76 = vsel %vm74, %v64, 0
    %v79 = vsel %vm74, %v65, 0
    %81 = vmatprep.subr.bf16.mxu0 %v61
    %82 = vmatpush1.bf16.msra.mxu0 %v60
    %83 = vmatprep.subr.bf16.mxu0 %v63
    %84 = vmatpush1.bf16.msra.mxu0 %v62
    %85 = vmatprep.subr.bf16.mxu0 %v79
    %86 = vmatpush1.bf16.msra.mxu0 %v76
    %87 = vmatprep.subr.bf16.mxu0 0
    %88 = vmatpush1.bf16.msra.mxu0 0
    %89 = vmatprep.subr.bf16.mxu0 0
    %90 = vmatpush1.bf16.msra.mxu0 0
    %91 = vmatprep.subr.bf16.mxu0 0
    %92 = vmatpush1.bf16.msra.mxu0 0
    %93 = vmatprep.subr.bf16.mxu0 0
    %94 = vmatpush1.bf16.msra.mxu0 0
    %95 = vmatprep.subr.bf16.mxu0 0
    %96 = vmatpush1.bf16.msra.mxu0 0
    %97 = vmatprep.subr.bf16.mxu0 0
    %98 = vmatpush1.bf16.msra.mxu0 0
    %99 = vmatprep.subr.bf16.mxu0 0
    %100 = vmatpush1.bf16.msra.mxu0 0
    %101 = vmatprep.subr.bf16.mxu0 0
    %102 = vmatpush1.bf16.msra.mxu0 0
    %103 = vmatprep.subr.bf16.mxu0 0
    %104 = vmatpush1.bf16.msra.mxu0 0
    %105 = vmatprep.subr.bf16.mxu0 0
    %106 = vmatpush1.bf16.msra.mxu0 0
    %107 = vmatprep.subr.bf16.mxu0 0
    %108 = vmatpush1.bf16.msra.mxu0 0
    %109 = vmatprep.subr.bf16.mxu0 0
    %110 = vmatpush1.bf16.msra.mxu0 0
    %111 = vmatprep.subr.bf16.mxu0 0
    %112 = vmatpush1.bf16.msra.mxu0 0
    %113 = vmatprep.mubr.bf16.mxu0 0
    %114 = vmatmul.mubr.bf16.gmra.mrb[0].mxu0 %v72
    %v115 = vpop.f32.mrb[0].mxu0
    %v116 = vadd.f32 0.0, %v115
    %v117 = vpop.f32.mrb[0].mxu0
    %v118 = vadd.f32 0.0, %v117
    %v119 = vpop.f32.mrb[0].mxu0
    %v120 = vadd.f32 0.0, %v119
    %v121 = vpop.f32.mrb[0].mxu0
    %v122 = vadd.f32 0.0, %v121
    %123 = vdwg.mxu0
    %v124 = vld [vmem:[%s2] sm:$0xff]
    %v125 = vld [vmem:[%s2 + $0x8] sm:$0xf]
    %127 = vset.pattern.permute.xlu0 0
    %128 = vperm.xlu0 %127, %v124
    %v129 = vpop.permute.xlu0 %128
    %132 = vset.pattern.permute.xlu0 0
    %133 = vperm.xlu0 %132, %v125
    %v134 = vpop.permute.xlu0 %133
    %v136 = vmul.f32 %v116, %v129
    %v137 = vmul.f32 %v118, %v129
    %v138 = vmul.f32 %v120, %v134
    %v139 = vmul.f32 %v122, %v134
    %v140 = vld [vmem:[%s3] sm:$0xff]
    %v141 = vld [vmem:[%s3 + $0x8] sm:$0xf]
    %143 = vset.pattern.permute.xlu0 0
    %144 = vperm.xlu0 %143, %v140
    %v145 = vpop.permute.xlu0 %144
    %148 = vset.pattern.permute.xlu0 0
    %149 = vperm.xlu0 %148, %v141
    %v150 = vpop.permute.xlu0 %149
    %v152 = vadd.f32 %v136, %v145
    %v153 = vadd.f32 %v137, %v145
    %v154 = vadd.f32 %v138, %v150
    %v155 = vadd.f32 %v139, %v150
    %v156 = vmax.f32 %v152, 0.0
    %v157 = vmax.f32 %v153, 0.0
    %v158 = vmax.f32 %v154, 0.0
    %v159 = vmax.f32 %v155, 0.0
    %160 = vst [vmem:[#allocation5] sm:$0xff] %v156
    %161 = vst [vmem:[#allocation5 + $0x8] sm:$0xff] %v157
    %162 = vst [vmem:[#allocation5 + $0x10] sm:$0xf] %v158
    %163 = vst [vmem:[#allocation5 + $0x18] sm:$0xf] %v159
    // Predicated region
    $region22: #{tpu_custom_call.1} parent=1 // pred_check
      _
    $region23: #{tpu_custom_call.1} parent=1 // pred_check_branch
      %165 = sbr.rel (0) target = $region25
    $region24: #{tpu_custom_call.1} parent=1 // pred_region
      %s167 = ssub.s32 512, 512
      %168 = vsyncadd [#allocation4], %s167
      %s169 = sshll.u32 [#allocation5], 4
      %s170 = int_to_ptr.vmem [resolvable:$true] %s169
      %175 = dma.vmem_to_hbm [thread:$0]  %s170, 512, %s4, [#allocation4], 256, 256, 16
    $region25: #{tpu_custom_call.1} parent=1 // pred_fallthru
      _
    // Predicated region
    $region26: #{tpu_custom_call.1} parent=1 // pred_check
      _
    $region27: #{tpu_custom_call.1} parent=1 // pred_check_branch
      %177 = sbr.rel (0) target = $region29
    $region28: #{tpu_custom_call.1} parent=1 // pred_region
      %178 = dma.done [#allocation4], 512
    $region29: #{tpu_custom_call.1} parent=1 // pred_fallthru
      _
    %179 = vsyncpa [#allocation3], 1
    %180 = vsyncpa [#allocation4], 1

</llo_original>
